<compile_context>
chip_gen: v7x
topology: tpu7x:2x2x1
jax: 0.10.0
libtpu: 0.0.40
codegen_flags: <defaults>
</compile_context>

<pallas_src>
import functools

import jax
import jax.numpy as jnp
from jax.experimental import pallas as pl
from jax.experimental.pallas import tpu as pltpu

KERNEL_SIZE = 5  # odd window (as used by Autoformer) -> output length == input length


def _series_decomp_kernel(x_ref, res_ref, mean_ref, *, kernel_size):
    # x_ref / res_ref / mean_ref : (TB, L, D) blocks.
    pad = (kernel_size - 1) // 2
    x = x_ref[...]                       # single full-block load
    tb, L, D = x.shape

    first = x[:, 0:1, :]                 # replicate-pad value at the front, (TB, 1, D)
    last = x[:, L - 1:L, :]              # replicate-pad value at the end,   (TB, 1, D)

    xf = x.astype(jnp.float32)
    acc = xf                             # centre tap initializes the vreg accumulator

    # Remaining 2*pad taps: each shifted tap (with replicate padding) is built
    # as a value (slice + broadcast + concat along the time/sublane axis) and
    # accumulated in registers -- no VMEM scratch, no partial/masked stores.
    # Taps are assembled in the input dtype and cast per-tap to f32 so bf16
    # inputs do not materialize a full-block f32 copy per tap.
    for s in range(1, pad + 1):
        # forward tap x[min(i+s, L-1)]
        fwd = jnp.concatenate(
            [x[:, s:, :], jnp.broadcast_to(last, (tb, s, D))], axis=1)
        # backward tap x[max(i-s, 0)]
        bwd = jnp.concatenate(
            [jnp.broadcast_to(first, (tb, s, D)), x[:, :L - s, :]], axis=1)
        acc = acc + fwd.astype(jnp.float32) + bwd.astype(jnp.float32)

    mean = acc * (1.0 / kernel_size)
    mean_ref[...] = mean.astype(mean_ref.dtype)   # full unmasked store
    res_ref[...] = (xf - mean).astype(res_ref.dtype)  # full unmasked store


def _tpu_vmem_and_cores():
    """Best-effort query of per-core VMEM bytes and TensorCores per chip."""
    vmem_bytes = 64 * 1024 * 1024   # conservative default (v7x per-core VMEM)
    n_cores = 1
    try:
        info = pltpu.get_tpu_info()
        vmem_bytes = int(getattr(info, "vmem_capacity_bytes", vmem_bytes))
        for name in ("num_cores", "tensor_cores_per_chip", "num_tensorcores"):
            v = getattr(info, name, None)
            if v:
                n_cores = int(v)
                break
    except Exception:
        pass
    return vmem_bytes, n_cores


def series_decomp(x, kernel_size=KERNEL_SIZE):
    """x: (B, L, D) -> (res, moving_mean), both (B, L, D). Assumes odd kernel_size
    and L >= (kernel_size-1)//2 + 1 (same as the Autoformer usage)."""
    B, L, D = x.shape
    itemsize = jnp.dtype(x.dtype).itemsize
    per_elem_bytes = L * D * itemsize

    vmem_phys, n_cores = _tpu_vmem_and_cores()

    # HBM-bound elementwise op: target ~4 MiB input blocks to amortize the
    # ~0.35us/grid-step overhead. Ragged last block is handled by pl.cdiv, so
    # prime/awkward B no longer collapses tb to 1.
    # NOTE: for very long horizons (L*D per element > a few MiB) the L axis
    # should additionally be tiled with a 2*pad halo; not needed at these sizes.
    target_bytes = 4 * 1024 * 1024
    tb = max(1, min(B, target_bytes // max(per_elem_bytes, 1)))
    # Only on multi-TensorCore chips (v7x): make sure every core gets work.
    # On single-TC v5e/v6e the largest block wins (grid is a serial loop).
    if n_cores > 1 and pl.cdiv(B, tb) < n_cores and B >= n_cores:
        tb = pl.cdiv(B, n_cores)
    # TODO(synk): for B < n_cores (e.g. B=1 inference on v7x), split the L axis
    # with a (kernel_size-1)//2 halo instead of shrinking tb.
    grid = (pl.cdiv(B, tb),)

    # VMEM plan: 1 input + 2 outputs, each double-buffered (~6x block), plus
    # headroom for the in-register f32 taps that may spill. Cap generation-
    # aware: ~48 MiB when physical VMEM is 64 MiB (v7x), ~100 MiB otherwise.
    block_bytes = tb * L * D * itemsize
    block_f32_bytes = tb * L * D * 4
    vmem_budget = 6 * block_bytes + 4 * block_f32_bytes + (2 << 20)
    vmem_cap = (48 * 1024 * 1024 if vmem_phys <= 64 * 1024 * 1024
                else 100 * 1024 * 1024)
    vmem_limit = int(min(max(vmem_budget, 32 * 1024 * 1024), vmem_cap, vmem_phys))

    spec = pl.BlockSpec((tb, L, D), lambda b: (b, 0, 0))
    kernel = functools.partial(_series_decomp_kernel, kernel_size=kernel_size)
    return pl.pallas_call(
        kernel,
        out_shape=(jax.ShapeDtypeStruct((B, L, D), x.dtype),
                   jax.ShapeDtypeStruct((B, L, D), x.dtype)),
        grid=grid,
        in_specs=[spec],
        out_specs=(spec, spec),
        compiler_params=pltpu.CompilerParams(
            dimension_semantics=("parallel",),
            vmem_limit_bytes=vmem_limit,
        ),
    )(x)


def _reference(x, kernel_size=KERNEL_SIZE):
    # pure-JAX reference matching the PyTorch forward
    pad = (kernel_size - 1) // 2
    front = jnp.repeat(x[:, 0:1, :], pad, axis=1)
    end = jnp.repeat(x[:, -1:, :], pad, axis=1)
    xpad = jnp.concatenate([front, x, end], axis=1)
    L = x.shape[1]
    mean = sum(xpad[:, j:j + L, :] for j in range(kernel_size)) / kernel_size
    return x - mean, mean


if __name__ == "__main__":
    key = jax.random.PRNGKey(0)
    # Small but lane-dense shapes: D is a multiple of 128 (Autoformer d_model style).
    B, L, D = 4, 24, 128
    x = jax.random.normal(key, (B, L, D), dtype=jnp.float32)

    res, mean = series_decomp(x)
    jax.block_until_ready(res)
    jax.block_until_ready(mean)

    res_ref, mean_ref = _reference(x)
    assert jnp.allclose(mean, mean_ref, atol=1e-5, rtol=1e-5), "moving_mean mismatch"
    assert jnp.allclose(res, res_ref, atol=1e-5, rtol=1e-5), "res mismatch"

    print("KERNEL_OK")
</pallas_src>

<mosaic_0001>
module attributes {stable_mosaic.version = 11 : i64} {
  func.func @_series_decomp_kernel(%arg0: i32, %arg1: memref<4x24x128xf32, #tpu.memory_space<vmem>>, %arg2: memref<4x24x128xf32, #tpu.memory_space<vmem>>, %arg3: memref<4x24x128xf32, #tpu.memory_space<vmem>>) attributes {dimension_semantics = [#tpu.dimension_semantics<parallel>], iteration_bounds = array<i64: 1>, scalar_prefetch = 0 : i64, scratch_operands = 0 : i64, tpu.core_type = #tpu.core_type<tc>, window_params = [{transform_indices = @transform_0, window_bounds = array<i64: 4, 24, 128>}, {transform_indices = @transform_1, window_bounds = array<i64: 4, 24, 128>}, {transform_indices = @transform_2, window_bounds = array<i64: 4, 24, 128>}]} {
    %c0 = arith.constant 0 : index
    %c0_0 = arith.constant 0 : index
    %c0_1 = arith.constant 0 : index
    %0 = vector.load %arg1[%c0, %c0_0, %c0_1] : memref<4x24x128xf32, #tpu.memory_space<vmem>>, vector<4x24x128xf32>
    %1 = vector.extract_strided_slice %0 {offsets = [0, 0, 0], sizes = [4, 1, 128], strides = [1, 1, 1]} : vector<4x24x128xf32> to vector<4x1x128xf32>
    %2 = vector.extract_strided_slice %0 {offsets = [0, 23, 0], sizes = [4, 1, 128], strides = [1, 1, 1]} : vector<4x24x128xf32> to vector<4x1x128xf32>
    %3 = vector.extract_strided_slice %0 {offsets = [0, 1, 0], sizes = [4, 23, 128], strides = [1, 1, 1]} : vector<4x24x128xf32> to vector<4x23x128xf32>
    %4 = tpu.concatenate %3, %2 in 1 : vector<4x23x128xf32>, vector<4x1x128xf32> -> vector<4x24x128xf32>
    %5 = vector.extract_strided_slice %0 {offsets = [0, 0, 0], sizes = [4, 23, 128], strides = [1, 1, 1]} : vector<4x24x128xf32> to vector<4x23x128xf32>
    %6 = tpu.concatenate %1, %5 in 1 : vector<4x1x128xf32>, vector<4x23x128xf32> -> vector<4x24x128xf32>
    %7 = arith.addf %0, %4 : vector<4x24x128xf32>
    %8 = arith.addf %7, %6 : vector<4x24x128xf32>
    %9 = vector.extract_strided_slice %0 {offsets = [0, 2, 0], sizes = [4, 22, 128], strides = [1, 1, 1]} : vector<4x24x128xf32> to vector<4x22x128xf32>
    %10 = vector.shape_cast %2 : vector<4x1x128xf32> to vector<4x1x128xf32>
    %11 = vector.broadcast %10 : vector<4x1x128xf32> to vector<4x2x128xf32>
    %12 = tpu.concatenate %9, %11 in 1 : vector<4x22x128xf32>, vector<4x2x128xf32> -> vector<4x24x128xf32>
    %13 = vector.shape_cast %1 : vector<4x1x128xf32> to vector<4x1x128xf32>
    %14 = vector.broadcast %13 : vector<4x1x128xf32> to vector<4x2x128xf32>
    %15 = vector.extract_strided_slice %0 {offsets = [0, 0, 0], sizes = [4, 22, 128], strides = [1, 1, 1]} : vector<4x24x128xf32> to vector<4x22x128xf32>
    %16 = tpu.concatenate %14, %15 in 1 : vector<4x2x128xf32>, vector<4x22x128xf32> -> vector<4x24x128xf32>
    %17 = arith.addf %8, %12 : vector<4x24x128xf32>
    %18 = arith.addf %17, %16 : vector<4x24x128xf32>
    %cst = arith.constant 2.000000e-01 : f32
    %19 = vector.broadcast %cst : f32 to vector<4x24x128xf32>
    %20 = arith.mulf %18, %19 : vector<4x24x128xf32>
    %c0_2 = arith.constant 0 : index
    %c0_3 = arith.constant 0 : index
    %c0_4 = arith.constant 0 : index
    %21 = vector.load %arg3[%c0_2, %c0_3, %c0_4] : memref<4x24x128xf32, #tpu.memory_space<vmem>>, vector<4x24x128xf32>
    tpu.vector_store %arg3[%c0_2, %c0_3, %c0_4], %20 {strides = array<i32>} : memref<4x24x128xf32, #tpu.memory_space<vmem>>, vector<4x24x128xf32>,
    %22 = arith.subf %0, %20 : vector<4x24x128xf32>
    %c0_5 = arith.constant 0 : index
    %c0_6 = arith.constant 0 : index
    %c0_7 = arith.constant 0 : index
    %23 = vector.load %arg2[%c0_5, %c0_6, %c0_7] : memref<4x24x128xf32, #tpu.memory_space<vmem>>, vector<4x24x128xf32>
    tpu.vector_store %arg2[%c0_5, %c0_6, %c0_7], %22 {strides = array<i32>} : memref<4x24x128xf32, #tpu.memory_space<vmem>>, vector<4x24x128xf32>,
    return
  }
  func.func @transform_0(%arg0: i32) -> (i32, i32, i32) {
    %c0_i32 = arith.constant 0 : i32
    %c0_i32_0 = arith.constant 0 : i32
    %c0_i32_1 = arith.constant 0 : i32
    return %arg0, %c0_i32, %c0_i32_0 : i32, i32, i32
  }
  func.func @transform_1(%arg0: i32) -> (i32, i32, i32) {
    %c0_i32 = arith.constant 0 : i32
    %c0_i32_0 = arith.constant 0 : i32
    %c0_i32_1 = arith.constant 0 : i32
    return %arg0, %c0_i32, %c0_i32_0 : i32, i32, i32
  }
  func.func @transform_2(%arg0: i32) -> (i32, i32, i32) {
    %c0_i32 = arith.constant 0 : i32
    %c0_i32_0 = arith.constant 0 : i32
    %c0_i32_1 = arith.constant 0 : i32
    return %arg0, %c0_i32, %c0_i32_0 : i32, i32, i32
  }
}

</mosaic_0001>

<llo_original>
// kernel: tpu_custom_call.1
$region0: #{tpu_custom_call.1}
  #allocation0 [shape = 'u32[]', space=smem, size = 0x4, offset = 0x4, fixed_abs, tag = 'smem constant byte address 0x4 - core index']
  #allocation1 [shape = 'u32[144,128]{1,0:T(1,128)}', space=vmem, size = 0x12000, scoped, tag = 'internal scratch']
  %s0 = inlined_call_operand.hbm [shape: f32[4,24,128], index: 0, kind: input, shape index: {}]
  %s1 = inlined_call_operand.hbm [shape: f32[4,24,128], index: 1, kind: output, shape index: {0}]
  %s2 = inlined_call_operand.hbm [shape: f32[4,24,128], index: 2, kind: output, shape index: {1}]
  %3 = xla_tuple %s1, %s2
  %s4 = sld [smem:[#allocation0]]
  $region26: #{tpu_custom_call.1} parent=0
    _
  %s6 = ssub.s32 1, %s4
  %s7 = scalar_select 0, %s6, %s4
  $region1: #{tpu_custom_call.1} parent=0
    #allocation2 [shape = 'u8[49152]{0}', space=vmem, size = 0xc000, scoped, tag = 'input window, operand 0, single buffered']
    #allocation3 [shape = 's32[1]{0}', space=sflag, size = 0x4, scoped, tag = 'scoped memory for tpu_custom_call.1']
    #allocation4 [shape = 's32[1]{0}', space=sflag, size = 0x4, scoped, tag = 'scoped memory for tpu_custom_call.1']
    #allocation5 [shape = 'u8[49152]{0}', space=vmem, size = 0xc000, scoped, tag = 'output window, operand 0, single buffered']
    #allocation6 [shape = 'u8[49152]{0}', space=vmem, size = 0xc000, scoped, tag = 'output window, operand 1, single buffered']
    #allocation7 [shape = 's32[1]{0}', space=sflag, size = 0x4, scoped, tag = 'scoped memory for tpu_custom_call.1']
    %8 = vsyncpa [#allocation3], 0
    %9 = vsyncpa [#allocation4], 0
    %10 = vsyncpa [#allocation7], 0
    // Predicated region
    $region2: #{tpu_custom_call.1} parent=1 // pred_check
      _
    $region3: #{tpu_custom_call.1} parent=1 // pred_check_branch
      %12 = sbr.rel (0) target = $region5
    $region4: #{tpu_custom_call.1} parent=1 // pred_region
      %s14 = ssub.s32 1536, 1536
      %15 = vsyncadd [#allocation3], %s14
      %s16 = sshll.u32 [#allocation2], 4
      %s17 = int_to_ptr.vmem [resolvable:$true] %s16
      %22 = dma.hbm_to_vmem [thread:$0]  %s0, 1536, %s17, [#allocation3], 128, 128, 8
    $region5: #{tpu_custom_call.1} parent=1 // pred_fallthru
      _
    // Predicated region
    $region6: #{tpu_custom_call.1} parent=1 // pred_check
      _
    $region7: #{tpu_custom_call.1} parent=1 // pred_check_branch
      %24 = sbr.rel (0) target = $region9
    $region8: #{tpu_custom_call.1} parent=1 // pred_region
      %25 = dma.done [#allocation3], 1536
    $region9: #{tpu_custom_call.1} parent=1 // pred_fallthru
      _
    %v26 = vld [vmem:[#allocation2] sm:$0xff]
    %v27 = vld [vmem:[#allocation2 + $0x8] sm:$0xff]
    %v28 = vld [vmem:[#allocation2 + $0x10] sm:$0xff]
    %v29 = vld [vmem:[#allocation2 + $0x18] sm:$0xff]
    %v30 = vld [vmem:[#allocation2 + $0x20] sm:$0xff]
    %v31 = vld [vmem:[#allocation2 + $0x28] sm:$0xff]
    %v32 = vld [vmem:[#allocation2 + $0x30] sm:$0xff]
    %v33 = vld [vmem:[#allocation2 + $0x38] sm:$0xff]
    %v34 = vld [vmem:[#allocation2 + $0x40] sm:$0xff]
    %v35 = vld [vmem:[#allocation2 + $0x48] sm:$0xff]
    %v36 = vld [vmem:[#allocation2 + $0x50] sm:$0xff]
    %v37 = vld [vmem:[#allocation2 + $0x58] sm:$0xff]
    %vm50 = vcmask 1046528
    %v51 = vrot.slane %v26, 1
    %v52 = vrot.slane %v27, 1
    %v53 = vsel %vm50, %v51, %v52
    %v54 = vrot.slane %v28, 1
    %v55 = vsel %vm50, %v52, %v54
    %v56 = vrot.slane %v29, 1
    %v57 = vrot.slane %v30, 1
    %v58 = vsel %vm50, %v56, %v57
    %v59 = vrot.slane %v31, 1
    %v60 = vsel %vm50, %v57, %v59
    %v61 = vrot.slane %v32, 1
    %v62 = vrot.slane %v33, 1
    %v63 = vsel %vm50, %v61, %v62
    %v64 = vrot.slane %v34, 1
    %v65 = vsel %vm50, %v62, %v64
    %v66 = vrot.slane %v35, 1
    %v67 = vrot.slane %v36, 1
    %v68 = vsel %vm50, %v66, %v67
    %v69 = vrot.slane %v37, 1
    %v70 = vsel %vm50, %v67, %v69
    %v83 = vsel %vm50, %v54, %v28
    %v84 = vsel %vm50, %v59, %v31
    %v85 = vsel %vm50, %v64, %v34
    %v86 = vsel %vm50, %v69, %v37
    %vm87 = vcmask 1040384
    %v88 = vrot.slane %v26, 7
    %v89 = vrot.slane %v27, 7
    %v90 = vsel %vm87, %v88, %v89
    %v91 = vrot.slane %v28, 7
    %v92 = vsel %vm87, %v89, %v91
    %v93 = vrot.slane %v29, 7
    %v94 = vrot.slane %v30, 7
    %v95 = vsel %vm87, %v93, %v94
    %v96 = vrot.slane %v31, 7
    %v97 = vsel %vm87, %v94, %v96
    %v98 = vrot.slane %v32, 7
    %v99 = vrot.slane %v33, 7
    %v100 = vsel %vm87, %v98, %v99
    %v101 = vrot.slane %v34, 7
    %v102 = vsel %vm87, %v99, %v101
    %v103 = vrot.slane %v35, 7
    %v104 = vrot.slane %v36, 7
    %v105 = vsel %vm87, %v103, %v104
    %v106 = vrot.slane %v37, 7
    %v107 = vsel %vm87, %v104, %v106
    %v120 = vsel %vm87, %v26, %v88
    %v121 = vsel %vm87, %v29, %v93
    %v122 = vsel %vm87, %v32, %v98
    %v123 = vsel %vm87, %v35, %v103
    %v124 = vadd.f32 %v26, %v53
    %v125 = vadd.f32 %v27, %v55
    %v126 = vadd.f32 %v28, %v83
    %v127 = vadd.f32 %v29, %v58
    %v128 = vadd.f32 %v30, %v60
    %v129 = vadd.f32 %v31, %v84
    %v130 = vadd.f32 %v32, %v63
    %v131 = vadd.f32 %v33, %v65
    %v132 = vadd.f32 %v34, %v85
    %v133 = vadd.f32 %v35, %v68
    %v134 = vadd.f32 %v36, %v70
    %v135 = vadd.f32 %v37, %v86
    %v136 = vadd.f32 %v124, %v120
    %v137 = vadd.f32 %v125, %v90
    %v138 = vadd.f32 %v126, %v92
    %v139 = vadd.f32 %v127, %v121
    %v140 = vadd.f32 %v128, %v95
    %v141 = vadd.f32 %v129, %v97
    %v142 = vadd.f32 %v130, %v122
    %v143 = vadd.f32 %v131, %v100
    %v144 = vadd.f32 %v132, %v102
    %v145 = vadd.f32 %v133, %v123
    %v146 = vadd.f32 %v134, %v105
    %v147 = vadd.f32 %v135, %v107
    %v148 = vlaneseq
    %v149 = vshrl.u32 %v148, 7
    %v150 = vsub.s32 7, %v149
    %v151 = vrot.slane %v28, %v150
    %v152 = vlaneseq
    %v153 = vshrl.u32 %v152, 7
    %v154 = vsub.s32 7, %v153
    %v155 = vrot.slane %v31, %v154
    %v156 = vlaneseq
    %v157 = vshrl.u32 %v156, 7
    %v158 = vsub.s32 7, %v157
    %v159 = vrot.slane %v34, %v158
    %v160 = vlaneseq
    %v161 = vshrl.u32 %v160, 7
    %v162 = vsub.s32 7, %v161
    %v163 = vrot.slane %v37, %v162
    %vm164 = vcmask 1045504
    %v165 = vrot.slane %v26, 2
    %v166 = vrot.slane %v27, 2
    %v167 = vsel %vm164, %v165, %v166
    %v168 = vrot.slane %v28, 2
    %v169 = vsel %vm164, %v166, %v168
    %v170 = vrot.slane %v29, 2
    %v171 = vrot.slane %v30, 2
    %v172 = vsel %vm164, %v170, %v171
    %v173 = vrot.slane %v31, 2
    %v174 = vsel %vm164, %v171, %v173
    %v175 = vrot.slane %v32, 2
    %v176 = vrot.slane %v33, 2
    %v177 = vsel %vm164, %v175, %v176
    %v178 = vrot.slane %v34, 2
    %v179 = vsel %vm164, %v176, %v178
    %v180 = vrot.slane %v35, 2
    %v181 = vrot.slane %v36, 2
    %v182 = vsel %vm164, %v180, %v181
    %v183 = vrot.slane %v37, 2
    %v184 = vsel %vm164, %v181, %v183
    %v197 = vsel %vm164, %v168, %v151
    %v198 = vsel %vm164, %v173, %v155
    %v199 = vsel %vm164, %v178, %v159
    %v200 = vsel %vm164, %v183, %v163
    %v201 = vlaneseq
    %v202 = vshrl.u32 %v201, 7
    %v203 = vsub.s32 0, %v202
    %v204 = vrot.slane %v26, %v203
    %v205 = vlaneseq
    %v206 = vshrl.u32 %v205, 7
    %v207 = vsub.s32 0, %v206
    %v208 = vrot.slane %v29, %v207
    %v209 = vlaneseq
    %v210 = vshrl.u32 %v209, 7
    %v211 = vsub.s32 0, %v210
    %v212 = vrot.slane %v32, %v211
    %v213 = vlaneseq
    %v214 = vshrl.u32 %v213, 7
    %v215 = vsub.s32 0, %v214
    %v216 = vrot.slane %v35, %v215
    %vm217 = vcmask 1041408
    %v218 = vrot.slane %v26, 6
    %v219 = vrot.slane %v27, 6
    %v220 = vsel %vm217, %v218, %v219
    %v221 = vrot.slane %v28, 6
    %v222 = vsel %vm217, %v219, %v221
    %v223 = vrot.slane %v29, 6
    %v224 = vrot.slane %v30, 6
    %v225 = vsel %vm217, %v223, %v224
    %v226 = vrot.slane %v31, 6
    %v227 = vsel %vm217, %v224, %v226
    %v228 = vrot.slane %v32, 6
    %v229 = vrot.slane %v33, 6
    %v230 = vsel %vm217, %v228, %v229
    %v231 = vrot.slane %v34, 6
    %v232 = vsel %vm217, %v229, %v231
    %v233 = vrot.slane %v35, 6
    %v234 = vrot.slane %v36, 6
    %v235 = vsel %vm217, %v233, %v234
    %v236 = vrot.slane %v37, 6
    %v237 = vsel %vm217, %v234, %v236
    %v250 = vsel %vm217, %v204, %v218
    %v251 = vsel %vm217, %v208, %v223
    %v252 = vsel %vm217, %v212, %v228
    %v253 = vsel %vm217, %v216, %v233
    %v254 = vadd.f32 %v136, %v167
    %v255 = vadd.f32 %v137, %v169
    %v256 = vadd.f32 %v138, %v197
    %v257 = vadd.f32 %v139, %v172
    %v258 = vadd.f32 %v140, %v174
    %v259 = vadd.f32 %v141, %v198
    %v260 = vadd.f32 %v142, %v177
    %v261 = vadd.f32 %v143, %v179
    %v262 = vadd.f32 %v144, %v199
    %v263 = vadd.f32 %v145, %v182
    %v264 = vadd.f32 %v146, %v184
    %v265 = vadd.f32 %v147, %v200
    %v266 = vadd.f32 %v254, %v250
    %v267 = vadd.f32 %v255, %v220
    %v268 = vadd.f32 %v256, %v222
    %v269 = vadd.f32 %v257, %v251
    %v270 = vadd.f32 %v258, %v225
    %v271 = vadd.f32 %v259, %v227
    %v272 = vadd.f32 %v260, %v252
    %v273 = vadd.f32 %v261, %v230
    %v274 = vadd.f32 %v262, %v232
    %v275 = vadd.f32 %v263, %v253
    %v276 = vadd.f32 %v264, %v235
    %v277 = vadd.f32 %v265, %v237
    %v278 = vmul.f32 %v266, 0.2
    %v279 = vmul.f32 %v267, 0.2
    %v280 = vmul.f32 %v268, 0.2
    %v281 = vmul.f32 %v269, 0.2
    %v282 = vmul.f32 %v270, 0.2
    %v283 = vmul.f32 %v271, 0.2
    %v284 = vmul.f32 %v272, 0.2
    %v285 = vmul.f32 %v273, 0.2
    %v286 = vmul.f32 %v274, 0.2
    %v287 = vmul.f32 %v275, 0.2
    %v288 = vmul.f32 %v276, 0.2
    %v289 = vmul.f32 %v277, 0.2
    %290 = vst [vmem:[#allocation6] sm:$0xff] %v278
    %291 = vst [vmem:[#allocation6 + $0x8] sm:$0xff] %v279
    %292 = vst [vmem:[#allocation6 + $0x10] sm:$0xff] %v280
    %293 = vst [vmem:[#allocation6 + $0x18] sm:$0xff] %v281
    %294 = vst [vmem:[#allocation6 + $0x20] sm:$0xff] %v282
    %295 = vst [vmem:[#allocation6 + $0x28] sm:$0xff] %v283
    %296 = vst [vmem:[#allocation6 + $0x30] sm:$0xff] %v284
    %297 = vst [vmem:[#allocation6 + $0x38] sm:$0xff] %v285
    %298 = vst [vmem:[#allocation6 + $0x40] sm:$0xff] %v286
    %299 = vst [vmem:[#allocation6 + $0x48] sm:$0xff] %v287
    %300 = vst [vmem:[#allocation6 + $0x50] sm:$0xff] %v288
    %301 = vst [vmem:[#allocation6 + $0x58] sm:$0xff] %v289
    %v302 = vsub.f32 %v26, %v278
    %v303 = vsub.f32 %v27, %v279
    %v304 = vsub.f32 %v28, %v280
    %v305 = vsub.f32 %v29, %v281
    %v306 = vsub.f32 %v30, %v282
    %v307 = vsub.f32 %v31, %v283
    %v308 = vsub.f32 %v32, %v284
    %v309 = vsub.f32 %v33, %v285
    %v310 = vsub.f32 %v34, %v286
    %v311 = vsub.f32 %v35, %v287
    %v312 = vsub.f32 %v36, %v288
    %v313 = vsub.f32 %v37, %v289
    %314 = vst [vmem:[#allocation5] sm:$0xff] %v302
    %315 = vst [vmem:[#allocation5 + $0x8] sm:$0xff] %v303
    %316 = vst [vmem:[#allocation5 + $0x10] sm:$0xff] %v304
    %317 = vst [vmem:[#allocation5 + $0x18] sm:$0xff] %v305
    %318 = vst [vmem:[#allocation5 + $0x20] sm:$0xff] %v306
    %319 = vst [vmem:[#allocation5 + $0x28] sm:$0xff] %v307
    %320 = vst [vmem:[#allocation5 + $0x30] sm:$0xff] %v308
    %321 = vst [vmem:[#allocation5 + $0x38] sm:$0xff] %v309
    %322 = vst [vmem:[#allocation5 + $0x40] sm:$0xff] %v310
    %323 = vst [vmem:[#allocation5 + $0x48] sm:$0xff] %v311
    %324 = vst [vmem:[#allocation5 + $0x50] sm:$0xff] %v312
    %325 = vst [vmem:[#allocation5 + $0x58] sm:$0xff] %v313
    // Predicated region
    $region10: #{tpu_custom_call.1} parent=1 // pred_check
      _
    $region11: #{tpu_custom_call.1} parent=1 // pred_check_branch
      %327 = sbr.rel (0) target = $region13
    $region12: #{tpu_custom_call.1} parent=1 // pred_region
      %s329 = ssub.s32 1536, 1536
      %330 = vsyncadd [#allocation4], %s329
      %s331 = sshll.u32 [#allocation5], 4
      %s332 = int_to_ptr.vmem [resolvable:$true] %s331
      %337 = dma.vmem_to_hbm [thread:$0]  %s332, 1536, %s1, [#allocation4], 128, 128, 8
    $region13: #{tpu_custom_call.1} parent=1 // pred_fallthru
      _
    // Predicated region
    $region14: #{tpu_custom_call.1} parent=1 // pred_check
      _
    $region15: #{tpu_custom_call.1} parent=1 // pred_check_branch
      %339 = sbr.rel (0) target = $region17
    $region16: #{tpu_custom_call.1} parent=1 // pred_region
      %s341 = ssub.s32 1536, 1536
      %342 = vsyncadd [#allocation7], %s341
      %s343 = sshll.u32 [#allocation6], 4
      %s344 = int_to_ptr.vmem [resolvable:$true] %s343
      %349 = dma.vmem_to_hbm [thread:$0]  %s344, 1536, %s2, [#allocation7], 128, 128, 8
    $region17: #{tpu_custom_call.1} parent=1 // pred_fallthru
      _
    // Predicated region
    $region18: #{tpu_custom_call.1} parent=1 // pred_check
      _
    $region19: #{tpu_custom_call.1} parent=1 // pred_check_branch
      %351 = sbr.rel (0) target = $region21
    $region20: #{tpu_custom_call.1} parent=1 // pred_region
      %352 = dma.done [#allocation4], 1536
    $region21: #{tpu_custom_call.1} parent=1 // pred_fallthru
      _
    // Predicated region
    $region22: #{tpu_custom_call.1} parent=1 // pred_check
      _
    $region23: #{tpu_custom_call.1} parent=1 // pred_check_branch
      %354 = sbr.rel (0) target = $region25
    $region24: #{tpu_custom_call.1} parent=1 // pred_region
      %355 = dma.done [#allocation7], 1536
    $region25: #{tpu_custom_call.1} parent=1 // pred_fallthru
      _
    %356 = vsyncpa [#allocation3], 1
    %357 = vsyncpa [#allocation4], 1
    %358 = vsyncpa [#allocation7], 1

</llo_original>
